<compile_context>
chip_gen: v6e
topology: v6e:2x2x1
jax: 0.10.0
libtpu: 0.0.40
codegen_flags: <defaults>
</compile_context>

<pallas_src>
import jax
import jax.numpy as jnp
from jax.experimental import pallas as pl
from jax.experimental.pallas import tpu as pltpu


def _luong_kernel(qp_ref, v_ref, score_ref, attn_ref, ctx_ref):
    # qp_ref: (Bt, H)    projected query q @ W
    # v_ref:  (Bt, S, H) values for this batch block
    # outputs: score (Bt, S) [without the b.q constant], attn (Bt, S), ctx (Bt, H)
    v = v_ref[...]                                   # (Bt, S, H)
    qp = qp_ref[...]                                 # (Bt, H)

    # score[b, s] = sum_h v[b, s, h] * qp[b, h]   (pure VPU work, no MXU needed)
    score = jnp.sum(v * qp[:, None, :], axis=-1)     # (Bt, S)

    # softmax over S (lane axis of the dense (Bt, S) tile)
    m = jnp.max(score, axis=-1, keepdims=True)       # (Bt, 1)
    e = jnp.exp(score - m)                           # (Bt, S)
    denom = jnp.sum(e, axis=-1, keepdims=True)       # (Bt, 1)
    r = pl.reciprocal(denom, approx=True)            # EUP slot (co-issues)
    r = r * (2.0 - denom * r)                        # one Newton step -> f32 accurate
    attn = e * r                                     # (Bt, S)

    # context[b, h] = sum_s attn[b, s] * v[b, s, h]
    ctx = jnp.sum(attn[:, :, None] * v, axis=1)      # (Bt, H)

    score_ref[...] = score
    attn_ref[...] = attn
    ctx_ref[...] = ctx.astype(ctx_ref.dtype)


def luong_attention_general(query, values, weight, bias, *, block_b=8):
    """query: (1, B, H); values: (B, S, H); weight: (H, H) (PyTorch Linear.weight);
    bias: (H,). Returns (context (B, H), attention_weights (B, S, 1), score (B, S, 1))."""
    B, S, H = values.shape
    q = jnp.squeeze(query, 0)                        # (B, H)

    # Fold the Linear into the query:
    #   (values @ W^T + b) . q  ==  values . (q @ W)  +  (q . b)
    q_proj = jnp.dot(q, weight)                      # (B, H)
    const = jnp.dot(q, bias)                         # (B,)

    Bt = block_b
    B_pad = ((B + Bt - 1) // Bt) * Bt
    if B_pad != B:
        pad = B_pad - B
        q_proj_p = jnp.pad(q_proj, ((0, pad), (0, 0)))
        values_p = jnp.pad(values, ((0, pad), (0, 0), (0, 0)))
    else:
        q_proj_p, values_p = q_proj, values

    num_blocks = B_pad // Bt

    out_shapes = (
        jax.ShapeDtypeStruct((B_pad, S), jnp.float32),   # raw score (no b.q term)
        jax.ShapeDtypeStruct((B_pad, S), jnp.float32),   # attention weights
        jax.ShapeDtypeStruct((B_pad, H), jnp.float32),   # context
    )

    raw_score, attn, ctx = pl.pallas_call(
        _luong_kernel,
        out_shape=out_shapes,
        grid=(num_blocks,),
        in_specs=[
            pl.BlockSpec((Bt, H), lambda i: (i, 0)),
            pl.BlockSpec((Bt, S, H), lambda i: (i, 0, 0)),
        ],
        out_specs=(
            pl.BlockSpec((Bt, S), lambda i: (i, 0)),
            pl.BlockSpec((Bt, S), lambda i: (i, 0)),
            pl.BlockSpec((Bt, H), lambda i: (i, 0)),
        ),
        compiler_params=pltpu.CompilerParams(
            dimension_semantics=("parallel",),
            vmem_limit_bytes=64 * 1024 * 1024,
        ),
    )(q_proj_p, values_p)

    # Strip batch padding; add back the softmax-invariant b.q constant; restore
    # the PyTorch (B, S, 1) output layout with free wrapper reshapes.
    raw_score = raw_score[:B]
    attn = attn[:B]
    ctx = ctx[:B]

    score = raw_score + const[:, None]               # (B, S)
    return ctx, attn[:, :, None], score[:, :, None]


def _reference(query, values, weight, bias):
    # Pure-JAX re-implementation of the PyTorch forward, for verification.
    q = jnp.squeeze(query, 0)[:, None, :]                        # (B, 1, H)
    q_t = jnp.swapaxes(q, 2, 1)                                  # (B, H, 1)
    wv = jnp.einsum("bsh,oh->bso", values, weight) + bias        # Linear
    score = jnp.matmul(wv, q_t)                                  # (B, S, 1)
    attn = jax.nn.softmax(score, axis=1)
    ctx = jnp.sum(attn * values, axis=1)                         # (B, H)
    return ctx, attn, score


if __name__ == "__main__":
    B, S, H = 2, 8, 32
    key = jax.random.PRNGKey(0)
    k_q, k_v, k_w, k_b = jax.random.split(key, 4)

    query = jax.random.normal(k_q, (1, B, H), dtype=jnp.float32)
    values = jax.random.normal(k_v, (B, S, H), dtype=jnp.float32)
    # nn.Linear(hidden, hidden) params, deterministic init (uniform like PyTorch)
    bound = 1.0 / (H ** 0.5)
    weight = jax.random.uniform(k_w, (H, H), jnp.float32, -bound, bound)
    bias = jax.random.uniform(k_b, (H,), jnp.float32, -bound, bound)

    ctx, attn, score = luong_attention_general(query, values, weight, bias)
    jax.block_until_ready((ctx, attn, score))

    ctx_r, attn_r, score_r = _reference(query, values, weight, bias)
    assert ctx.shape == (B, H) and attn.shape == (B, S, 1) and score.shape == (B, S, 1)
    assert jnp.allclose(ctx, ctx_r, atol=2e-5, rtol=1e-5)
    assert jnp.allclose(attn, attn_r, atol=2e-5, rtol=1e-5)
    assert jnp.allclose(score, score_r, atol=2e-5, rtol=1e-5)

    print("KERNEL_OK")
</pallas_src>

<mosaic_0001>
module attributes {stable_mosaic.version = 11 : i64} {
  func.func @_luong_kernel(%arg0: i32, %arg1: memref<8x32xf32, #tpu.memory_space<vmem>>, %arg2: memref<8x8x32xf32, #tpu.memory_space<vmem>>, %arg3: memref<8x8xf32, #tpu.memory_space<vmem>>, %arg4: memref<8x8xf32, #tpu.memory_space<vmem>>, %arg5: memref<8x32xf32, #tpu.memory_space<vmem>>) attributes {dimension_semantics = [#tpu.dimension_semantics<parallel>], iteration_bounds = array<i64: 1>, scalar_prefetch = 0 : i64, scratch_operands = 0 : i64, tpu.core_type = #tpu.core_type<tc>, window_params = [{transform_indices = @transform_0, window_bounds = array<i64: 8, 32>}, {transform_indices = @transform_1, window_bounds = array<i64: 8, 8, 32>}, {transform_indices = @transform_2, window_bounds = array<i64: 8, 8>}, {transform_indices = @transform_3, window_bounds = array<i64: 8, 8>}, {transform_indices = @transform_4, window_bounds = array<i64: 8, 32>}]} {
    %c0 = arith.constant 0 : index
    %c0_0 = arith.constant 0 : index
    %c0_1 = arith.constant 0 : index
    %0 = vector.load %arg2[%c0, %c0_0, %c0_1] : memref<8x8x32xf32, #tpu.memory_space<vmem>>, vector<8x8x32xf32>
    %c0_2 = arith.constant 0 : index
    %c0_3 = arith.constant 0 : index
    %1 = vector.load %arg1[%c0_2, %c0_3] : memref<8x32xf32, #tpu.memory_space<vmem>>, vector<8x32xf32>
    %2 = vector.shape_cast %1 : vector<8x32xf32> to vector<8x1x32xf32>
    %3 = vector.broadcast %2 : vector<8x1x32xf32> to vector<8x8x32xf32>
    %4 = arith.mulf %0, %3 : vector<8x8x32xf32>
    %cst = arith.constant dense<0.000000e+00> : vector<8x8xf32>
    %5 = vector.multi_reduction <add>, %4, %cst [2] : vector<8x8x32xf32> to vector<8x8xf32>
    %cst_4 = arith.constant dense<0xFF800000> : vector<8xf32>
    %6 = vector.multi_reduction <maximumf>, %5, %cst_4 [1] : vector<8x8xf32> to vector<8xf32>
    %7 = vector.shape_cast %6 : vector<8xf32> to vector<8x1xf32>
    %8 = vector.broadcast %7 : vector<8x1xf32> to vector<8x8xf32>
    %9 = arith.subf %5, %8 : vector<8x8xf32>
    %10 = math.exp %9 : vector<8x8xf32>
    %cst_5 = arith.constant dense<0.000000e+00> : vector<8xf32>
    %11 = vector.multi_reduction <add>, %10, %cst_5 [1] : vector<8x8xf32> to vector<8xf32>
    %12 = vector.shape_cast %11 : vector<8xf32> to vector<8x1xf32>
    %13 = tpu.reciprocal %12 {approx = true} : vector<8x1xf32> -> vector<8x1xf32>
    %14 = arith.mulf %12, %13 : vector<8x1xf32>
    %cst_6 = arith.constant 2.000000e+00 : f32
    %15 = vector.broadcast %cst_6 : f32 to vector<8x1xf32>
    %16 = arith.subf %15, %14 : vector<8x1xf32>
    %17 = arith.mulf %13, %16 : vector<8x1xf32>
    %18 = vector.broadcast %17 : vector<8x1xf32> to vector<8x8xf32>
    %19 = arith.mulf %10, %18 : vector<8x8xf32>
    %20 = vector.shape_cast %19 : vector<8x8xf32> to vector<8x8x1xf32>
    %21 = vector.broadcast %20 : vector<8x8x1xf32> to vector<8x8x32xf32>
    %22 = arith.mulf %21, %0 : vector<8x8x32xf32>
    %cst_7 = arith.constant dense<0.000000e+00> : vector<8x32xf32>
    %23 = vector.multi_reduction <add>, %22, %cst_7 [1] : vector<8x8x32xf32> to vector<8x32xf32>
    %c0_8 = arith.constant 0 : index
    %c0_9 = arith.constant 0 : index
    %24 = vector.load %arg3[%c0_8, %c0_9] : memref<8x8xf32, #tpu.memory_space<vmem>>, vector<8x8xf32>
    tpu.vector_store %arg3[%c0_8, %c0_9], %5 {strides = array<i32>} : memref<8x8xf32, #tpu.memory_space<vmem>>, vector<8x8xf32>,
    %c0_10 = arith.constant 0 : index
    %c0_11 = arith.constant 0 : index
    %25 = vector.load %arg4[%c0_10, %c0_11] : memref<8x8xf32, #tpu.memory_space<vmem>>, vector<8x8xf32>
    tpu.vector_store %arg4[%c0_10, %c0_11], %19 {strides = array<i32>} : memref<8x8xf32, #tpu.memory_space<vmem>>, vector<8x8xf32>,
    %c0_12 = arith.constant 0 : index
    %c0_13 = arith.constant 0 : index
    %26 = vector.load %arg5[%c0_12, %c0_13] : memref<8x32xf32, #tpu.memory_space<vmem>>, vector<8x32xf32>
    tpu.vector_store %arg5[%c0_12, %c0_13], %23 {strides = array<i32>} : memref<8x32xf32, #tpu.memory_space<vmem>>, vector<8x32xf32>,
    return
  }
  func.func @transform_0(%arg0: i32) -> (i32, i32) {
    %c0_i32 = arith.constant 0 : i32
    %c0_i32_0 = arith.constant 0 : i32
    return %arg0, %c0_i32 : i32, i32
  }
  func.func @transform_1(%arg0: i32) -> (i32, i32, i32) {
    %c0_i32 = arith.constant 0 : i32
    %c0_i32_0 = arith.constant 0 : i32
    %c0_i32_1 = arith.constant 0 : i32
    return %arg0, %c0_i32, %c0_i32_0 : i32, i32, i32
  }
  func.func @transform_2(%arg0: i32) -> (i32, i32) {
    %c0_i32 = arith.constant 0 : i32
    %c0_i32_0 = arith.constant 0 : i32
    return %arg0, %c0_i32 : i32, i32
  }
  func.func @transform_3(%arg0: i32) -> (i32, i32) {
    %c0_i32 = arith.constant 0 : i32
    %c0_i32_0 = arith.constant 0 : i32
    return %arg0, %c0_i32 : i32, i32
  }
  func.func @transform_4(%arg0: i32) -> (i32, i32) {
    %c0_i32 = arith.constant 0 : i32
    %c0_i32_0 = arith.constant 0 : i32
    return %arg0, %c0_i32 : i32, i32
  }
}

</mosaic_0001>

<llo_original>
// kernel: tpu_custom_call.1
$region0: #{tpu_custom_call.1}
  #allocation0 [shape = 'u32[]', space=smem, size = 0x4, offset = 0x4, fixed_abs, tag = 'smem constant byte address 0x4 - core index']
  #allocation1 [shape = 'u32[144,128]{1,0:T(1,128)}', space=vmem, size = 0x12000, scoped, tag = 'internal scratch']
  %s0 = inlined_call_operand.hbm [shape: f32[8,32], index: 0, kind: input, shape index: {}]
  %s1 = inlined_call_operand.hbm [shape: f32[8,8,32], index: 1, kind: input, shape index: {}]
  %s2 = inlined_call_operand.hbm [shape: f32[8,8], index: 2, kind: output, shape index: {0}]
  %s3 = inlined_call_operand.hbm [shape: f32[8,8], index: 3, kind: output, shape index: {1}]
  %s4 = inlined_call_operand.hbm [shape: f32[8,32], index: 4, kind: output, shape index: {2}]
  %5 = xla_tuple %s2, %s3, %s4
  %s6 = sld [smem:[#allocation0]]
  $region42: #{tpu_custom_call.1} parent=0
    _
  %s8 = ssub.s32 1, %s6
  %s9 = scalar_select 0, %s8, %s6
  $region1: #{tpu_custom_call.1} parent=0
    #allocation2 [shape = 'u8[4096]{0}', space=vmem, size = 0x1000, scoped, tag = 'input window, operand 0, single buffered']
    #allocation3 [shape = 's32[1]{0}', space=sflag, size = 0x4, scoped, tag = 'scoped memory for tpu_custom_call.1']
    #allocation4 [shape = 's32[1]{0}', space=sflag, size = 0x4, scoped, tag = 'scoped memory for tpu_custom_call.1']
    #allocation5 [shape = 'u8[32768]{0}', space=vmem, size = 0x8000, scoped, tag = 'input window, operand 1, single buffered']
    #allocation6 [shape = 's32[1]{0}', space=sflag, size = 0x4, scoped, tag = 'scoped memory for tpu_custom_call.1']
    #allocation7 [shape = 'u8[4096]{0}', space=vmem, size = 0x1000, scoped, tag = 'output window, operand 0, single buffered']
    #allocation8 [shape = 'u8[4096]{0}', space=vmem, size = 0x1000, scoped, tag = 'output window, operand 1, single buffered']
    #allocation9 [shape = 's32[1]{0}', space=sflag, size = 0x4, scoped, tag = 'scoped memory for tpu_custom_call.1']
    #allocation10 [shape = 'u8[4096]{0}', space=vmem, size = 0x1000, scoped, tag = 'output window, operand 2, single buffered']
    %10 = vsyncpa [#allocation3], 0
    %11 = vsyncpa [#allocation6], 0
    %12 = vsyncpa [#allocation4], 0
    %13 = vsyncpa [#allocation9], 0
    // Predicated region
    $region2: #{tpu_custom_call.1} parent=1 // pred_check
      _
    $region3: #{tpu_custom_call.1} parent=1 // pred_check_branch
      %15 = sbr.rel (0) target = $region5
    $region4: #{tpu_custom_call.1} parent=1 // pred_region
      %s17 = ssub.s32 128, 128
      %18 = vsyncadd [#allocation3], %s17
      %s20 = sshll.u32 [#allocation2], 4
      %s21 = int_to_ptr.vmem [resolvable:$true] %s20
      %23 = dma.hbm_to_vmem [thread:$0]  %s0, 128, %s21, [#allocation3]
    $region5: #{tpu_custom_call.1} parent=1 // pred_fallthru
      _
    // Predicated region
    $region6: #{tpu_custom_call.1} parent=1 // pred_check
      _
    $region7: #{tpu_custom_call.1} parent=1 // pred_check_branch
      %25 = sbr.rel (0) target = $region9
    $region8: #{tpu_custom_call.1} parent=1 // pred_region
      %s27 = ssub.s32 1024, 1024
      %28 = vsyncadd [#allocation6], %s27
      %s29 = sshll.u32 [#allocation5], 4
      %s30 = int_to_ptr.vmem [resolvable:$true] %s29
      %35 = dma.hbm_to_vmem [thread:$0]  %s1, 1024, %s30, [#allocation6], 128, 128, 8
    $region9: #{tpu_custom_call.1} parent=1 // pred_fallthru
      _
    // Predicated region
    $region10: #{tpu_custom_call.1} parent=1 // pred_check
      _
    $region11: #{tpu_custom_call.1} parent=1 // pred_check_branch
      %37 = sbr.rel (0) target = $region13
    $region12: #{tpu_custom_call.1} parent=1 // pred_region
      %38 = dma.done [#allocation3], 128
    $region13: #{tpu_custom_call.1} parent=1 // pred_fallthru
      _
    // Predicated region
    $region14: #{tpu_custom_call.1} parent=1 // pred_check
      _
    $region15: #{tpu_custom_call.1} parent=1 // pred_check_branch
      %40 = sbr.rel (0) target = $region17
    $region16: #{tpu_custom_call.1} parent=1 // pred_region
      %41 = dma.done [#allocation6], 1024
    $region17: #{tpu_custom_call.1} parent=1 // pred_fallthru
      _
    %v42 = vld [vmem:[#allocation5] sm:$0xff]
    %v43 = vld [vmem:[#allocation5 + $0x8] sm:$0xff]
    %v44 = vld [vmem:[#allocation5 + $0x10] sm:$0xff]
    %v45 = vld [vmem:[#allocation5 + $0x18] sm:$0xff]
    %v46 = vld [vmem:[#allocation5 + $0x20] sm:$0xff]
    %v47 = vld [vmem:[#allocation5 + $0x28] sm:$0xff]
    %v48 = vld [vmem:[#allocation5 + $0x30] sm:$0xff]
    %v49 = vld [vmem:[#allocation5 + $0x38] sm:$0xff]
    %v50 = vld [vmem:[#allocation2] sm:$0xff]
    %v52 = vcombine.high %v50, %v50
    %v54 = vunpack.c.l.s4 1966171168
    %v55 = vunpack.c.0.s8 %v54
    %v56 = vlaneseq
    %v57 = vshrl.u32 %v56, 7
    %v58 = vsub.s32 %v55, %v57
    %v59 = vrot.slane %v50, %v58
    %v61 = vunpack.c.l.s4 1966171168
    %v62 = vunpack.c.0.s8 %v61
    %v63 = vlaneseq
    %v64 = vshrl.u32 %v63, 7
    %v65 = vsub.s32 %v62, %v64
    %v66 = vrot.slane %v52, %v65
    %v67 = vcombine.high %v59, %v59
    %v68 = vcombine.high %v66, %v66
    %v70 = vunpack.c.l.s4 1966171168
    %v71 = vunpack.c.0.s8 %v70
    %v72 = vlaneseq
    %v73 = vshrl.u32 %v72, 7
    %v74 = vsub.s32 %v71, %v73
    %v75 = vrot.slane %v59, %v74
    %v77 = vunpack.c.l.s4 1966171168
    %v78 = vunpack.c.0.s8 %v77
    %v79 = vlaneseq
    %v80 = vshrl.u32 %v79, 7
    %v81 = vsub.s32 %v78, %v80
    %v82 = vrot.slane %v66, %v81
    %v84 = vunpack.c.l.s4 1966171168
    %v85 = vunpack.c.0.s8 %v84
    %v86 = vlaneseq
    %v87 = vshrl.u32 %v86, 7
    %v88 = vsub.s32 %v85, %v87
    %v89 = vrot.slane %v67, %v88
    %v91 = vunpack.c.l.s4 1966171168
    %v92 = vunpack.c.0.s8 %v91
    %v93 = vlaneseq
    %v94 = vshrl.u32 %v93, 7
    %v95 = vsub.s32 %v92, %v94
    %v96 = vrot.slane %v68, %v95
    %v97 = vcombine.high %v75, %v75
    %v98 = vcombine.high %v82, %v82
    %v99 = vcombine.high %v89, %v89
    %v100 = vcombine.high %v96, %v96
    %v101 = vlaneseq
    %v102 = vshrl.u32 %v101, 7
    %v103 = vsub.s32 0, %v102
    %v104 = vrot.slane %v75, %v103
    %v105 = vlaneseq
    %v106 = vshrl.u32 %v105, 7
    %v107 = vsub.s32 0, %v106
    %v108 = vrot.slane %v89, %v107
    %v109 = vlaneseq
    %v110 = vshrl.u32 %v109, 7
    %v111 = vsub.s32 0, %v110
    %v112 = vrot.slane %v97, %v111
    %v113 = vlaneseq
    %v114 = vshrl.u32 %v113, 7
    %v115 = vsub.s32 0, %v114
    %v116 = vrot.slane %v99, %v115
    %v117 = vlaneseq
    %v118 = vshrl.u32 %v117, 7
    %v119 = vsub.s32 0, %v118
    %v120 = vrot.slane %v82, %v119
    %v121 = vlaneseq
    %v122 = vshrl.u32 %v121, 7
    %v123 = vsub.s32 0, %v122
    %v124 = vrot.slane %v96, %v123
    %v125 = vlaneseq
    %v126 = vshrl.u32 %v125, 7
    %v127 = vsub.s32 0, %v126
    %v128 = vrot.slane %v98, %v127
    %v129 = vlaneseq
    %v130 = vshrl.u32 %v129, 7
    %v131 = vsub.s32 0, %v130
    %v132 = vrot.slane %v100, %v131
    %v141 = vmul.f32 %v42, %v104
    %v142 = vmul.f32 %v43, %v108
    %v143 = vmul.f32 %v44, %v112
    %v144 = vmul.f32 %v45, %v116
    %v145 = vmul.f32 %v46, %v120
    %v146 = vmul.f32 %v47, %v124
    %v147 = vmul.f32 %v48, %v128
    %v148 = vmul.f32 %v49, %v132
    %vm149 = vcmask 261120
    %v150 = vsel %vm149, %v141, 0.0
    %151 = vadd.xlane.f32.xlu0 %v150
    %v152 = vpop.xlane.xlu0 %151
    %v153 = vsel %vm149, %v142, 0.0
    %154 = vadd.xlane.f32.xlu0 %v153
    %v155 = vpop.xlane.xlu0 %154
    %v156 = vsel %vm149, %v143, 0.0
    %157 = vadd.xlane.f32.xlu0 %v156
    %v158 = vpop.xlane.xlu0 %157
    %v159 = vsel %vm149, %v144, 0.0
    %160 = vadd.xlane.f32.xlu0 %v159
    %v161 = vpop.xlane.xlu0 %160
    %v162 = vsel %vm149, %v145, 0.0
    %163 = vadd.xlane.f32.xlu0 %v162
    %v164 = vpop.xlane.xlu0 %163
    %v165 = vsel %vm149, %v146, 0.0
    %166 = vadd.xlane.f32.xlu0 %v165
    %v167 = vpop.xlane.xlu0 %166
    %v168 = vsel %vm149, %v147, 0.0
    %169 = vadd.xlane.f32.xlu0 %v168
    %v170 = vpop.xlane.xlu0 %169
    %v171 = vsel %vm149, %v148, 0.0
    %172 = vadd.xlane.f32.xlu0 %v171
    %v173 = vpop.xlane.xlu0 %172
    %v182 = vlaneseq
    %v183 = vand.u32 %v182, 127
    %v184 = vlaneseq
    %v185 = vshrl.u32 %v184, 7
    %v186 = vsub.s32 %v183, %v185
    %v187 = vrot.slane %v152, %v186
    %v188 = vlaneseq
    %v189 = vshrl.u32 %v188, 7
    %v190 = vsub.s32 %v183, %v189
    %v191 = vrot.slane %v155, %v190
    %v192 = vlaneseq
    %v193 = vshrl.u32 %v192, 7
    %v194 = vsub.s32 %v183, %v193
    %v195 = vrot.slane %v158, %v194
    %v196 = vlaneseq
    %v197 = vshrl.u32 %v196, 7
    %v198 = vsub.s32 %v183, %v197
    %v199 = vrot.slane %v161, %v198
    %v200 = vlaneseq
    %v201 = vshrl.u32 %v200, 7
    %v202 = vsub.s32 %v183, %v201
    %v203 = vrot.slane %v164, %v202
    %v204 = vlaneseq
    %v205 = vshrl.u32 %v204, 7
    %v206 = vsub.s32 %v183, %v205
    %v207 = vrot.slane %v167, %v206
    %v208 = vlaneseq
    %v209 = vshrl.u32 %v208, 7
    %v210 = vsub.s32 %v183, %v209
    %v211 = vrot.slane %v170, %v210
    %v212 = vlaneseq
    %v213 = vshrl.u32 %v212, 7
    %v214 = vsub.s32 %v183, %v213
    %v215 = vrot.slane %v173, %v214
    %vm216 = vcmask 1041409
    %v217 = vsel %vm216, %v191, %v187
    %vm218 = vcmask 1042434
    %v219 = vsel %vm218, %v195, %v217
    %vm220 = vcmask 1043459
    %v221 = vsel %vm220, %v199, %v219
    %vm222 = vcmask 1044484
    %v223 = vsel %vm222, %v203, %v221
    %vm224 = vcmask 1045509
    %v225 = vsel %vm224, %v207, %v223
    %vm226 = vcmask 1046534
    %v227 = vsel %vm226, %v211, %v225
    %vm228 = vcmask 1047559
    %v229 = vsel %vm228, %v215, %v227
    %vm231 = vcmask 64512
    %v232 = vsel %vm231, %v229, -inf
    %233 = vmax.xlane.f32.xlu0 %v232
    %v234 = vpop.xlane.xlu0 %233
    %v236 = vlaneseq
    %v237 = vshrl.u32 %v236, 7
    %v238 = vsub.s32 0, %v237
    %v239 = vrot.slane %v234, %v238
    %v240 = vlaneseq
    %v241 = vshrl.u32 %v240, 7
    %v242 = vsub.s32 1, %v241
    %v243 = vrot.slane %v234, %v242
    %v244 = vlaneseq
    %v245 = vshrl.u32 %v244, 7
    %v246 = vsub.s32 2, %v245
    %v247 = vrot.slane %v234, %v246
    %v248 = vlaneseq
    %v249 = vshrl.u32 %v248, 7
    %v250 = vsub.s32 3, %v249
    %v251 = vrot.slane %v234, %v250
    %v252 = vlaneseq
    %v253 = vshrl.u32 %v252, 7
    %v254 = vsub.s32 4, %v253
    %v255 = vrot.slane %v234, %v254
    %v256 = vlaneseq
    %v257 = vshrl.u32 %v256, 7
    %v258 = vsub.s32 5, %v257
    %v259 = vrot.slane %v234, %v258
    %v260 = vlaneseq
    %v261 = vshrl.u32 %v260, 7
    %v262 = vsub.s32 6, %v261
    %v263 = vrot.slane %v234, %v262
    %v264 = vlaneseq
    %v265 = vshrl.u32 %v264, 7
    %v266 = vsub.s32 7, %v265
    %v267 = vrot.slane %v234, %v266
    %v276 = vsub.f32 %v152, %v239
    %v277 = vsub.f32 %v155, %v243
    %v278 = vsub.f32 %v158, %v247
    %v279 = vsub.f32 %v161, %v251
    %v280 = vsub.f32 %v164, %v255
    %v281 = vsub.f32 %v167, %v259
    %v282 = vsub.f32 %v170, %v263
    %v283 = vsub.f32 %v173, %v267
    %v284 = vmul.f32 %v276, 1.442695
    %v285 = vpow.pop %v284
    %v286 = vmul.f32 %v277, 1.442695
    %v287 = vpow.pop %v286
    %v288 = vmul.f32 %v278, 1.442695
    %v289 = vpow.pop %v288
    %v290 = vmul.f32 %v279, 1.442695
    %v291 = vpow.pop %v290
    %v292 = vmul.f32 %v280, 1.442695
    %v293 = vpow.pop %v292
    %v294 = vmul.f32 %v281, 1.442695
    %v295 = vpow.pop %v294
    %v296 = vmul.f32 %v282, 1.442695
    %v297 = vpow.pop %v296
    %v298 = vmul.f32 %v283, 1.442695
    %v299 = vpow.pop %v298
    %308 = vset.pattern.permute.xlu0 0
    %309 = vperm.xlu0 %308, %v285
    %v310 = vpop.permute.xlu0 %309
    %311 = vset.pattern.permute.xlu0 0
    %312 = vperm.xlu0 %311, %v287
    %v313 = vpop.permute.xlu0 %312
    %314 = vset.pattern.permute.xlu0 0
    %315 = vperm.xlu0 %314, %v289
    %v316 = vpop.permute.xlu0 %315
    %317 = vset.pattern.permute.xlu0 0
    %318 = vperm.xlu0 %317, %v291
    %v319 = vpop.permute.xlu0 %318
    %320 = vset.pattern.permute.xlu0 0
    %321 = vperm.xlu0 %320, %v293
    %v322 = vpop.permute.xlu0 %321
    %323 = vset.pattern.permute.xlu0 0
    %324 = vperm.xlu0 %323, %v295
    %v325 = vpop.permute.xlu0 %324
    %326 = vset.pattern.permute.xlu0 0
    %327 = vperm.xlu0 %326, %v297
    %v328 = vpop.permute.xlu0 %327
    %329 = vset.pattern.permute.xlu0 0
    %330 = vperm.xlu0 %329, %v299
    %v331 = vpop.permute.xlu0 %330
    %v332 = vlaneseq
    %v333 = vshrl.u32 %v332, 7
    %v334 = vsub.s32 %v183, %v333
    %v335 = vrot.slane %v310, %v334
    %v336 = vlaneseq
    %v337 = vshrl.u32 %v336, 7
    %v338 = vsub.s32 %v183, %v337
    %v339 = vrot.slane %v313, %v338
    %v340 = vlaneseq
    %v341 = vshrl.u32 %v340, 7
    %v342 = vsub.s32 %v183, %v341
    %v343 = vrot.slane %v316, %v342
    %v344 = vlaneseq
    %v345 = vshrl.u32 %v344, 7
    %v346 = vsub.s32 %v183, %v345
    %v347 = vrot.slane %v319, %v346
    %v348 = vlaneseq
    %v349 = vshrl.u32 %v348, 7
    %v350 = vsub.s32 %v183, %v349
    %v351 = vrot.slane %v322, %v350
    %v352 = vlaneseq
    %v353 = vshrl.u32 %v352, 7
    %v354 = vsub.s32 %v183, %v353
    %v355 = vrot.slane %v325, %v354
    %v356 = vlaneseq
    %v357 = vshrl.u32 %v356, 7
    %v358 = vsub.s32 %v183, %v357
    %v359 = vrot.slane %v328, %v358
    %v360 = vlaneseq
    %v361 = vshrl.u32 %v360, 7
    %v362 = vsub.s32 %v183, %v361
    %v363 = vrot.slane %v331, %v362
    %v364 = vsel %vm216, %v339, %v335
    %v365 = vsel %vm218, %v343, %v364
    %v366 = vsel %vm220, %v347, %v365
    %v367 = vsel %vm222, %v351, %v366
    %v368 = vsel %vm224, %v355, %v367
    %v369 = vsel %vm226, %v359, %v368
    %v370 = vsel %vm228, %v363, %v369
    %v372 = vsel %vm231, %v370, 0.0
    %373 = vadd.xlane.f32.xlu0 %v372
    %v374 = vpop.xlane.xlu0 %373
    %v375 = vrcp.pop %v374
    %v376 = vmul.f32 %v374, %v375
    %v377 = vsub.f32 2.0, %v376
    %v378 = vmul.f32 %v375, %v377
    %v380 = vlaneseq
    %v381 = vshrl.u32 %v380, 7
    %v382 = vsub.s32 0, %v381
    %v383 = vrot.slane %v378, %v382
    %v384 = vlaneseq
    %v385 = vshrl.u32 %v384, 7
    %v386 = vsub.s32 1, %v385
    %v387 = vrot.slane %v378, %v386
    %v388 = vlaneseq
    %v389 = vshrl.u32 %v388, 7
    %v390 = vsub.s32 2, %v389
    %v391 = vrot.slane %v378, %v390
    %v392 = vlaneseq
    %v393 = vshrl.u32 %v392, 7
    %v394 = vsub.s32 3, %v393
    %v395 = vrot.slane %v378, %v394
    %v396 = vlaneseq
    %v397 = vshrl.u32 %v396, 7
    %v398 = vsub.s32 4, %v397
    %v399 = vrot.slane %v378, %v398
    %v400 = vlaneseq
    %v401 = vshrl.u32 %v400, 7
    %v402 = vsub.s32 5, %v401
    %v403 = vrot.slane %v378, %v402
    %v404 = vlaneseq
    %v405 = vshrl.u32 %v404, 7
    %v406 = vsub.s32 6, %v405
    %v407 = vrot.slane %v378, %v406
    %v408 = vlaneseq
    %v409 = vshrl.u32 %v408, 7
    %v410 = vsub.s32 7, %v409
    %v411 = vrot.slane %v378, %v410
    %v420 = vmul.f32 %v285, %v383
    %v421 = vmul.f32 %v287, %v387
    %v422 = vmul.f32 %v289, %v391
    %v423 = vmul.f32 %v291, %v395
    %v424 = vmul.f32 %v293, %v399
    %v425 = vmul.f32 %v295, %v403
    %v426 = vmul.f32 %v297, %v407
    %v427 = vmul.f32 %v299, %v411
    %429 = vset.pattern.permute.xlu0 0
    %430 = vperm.xlu0 %429, %v420
    %v431 = vpop.permute.xlu0 %430
    %434 = vset.pattern.permute.xlu0 0
    %435 = vperm.xlu0 %434, %v421
    %v436 = vpop.permute.xlu0 %435
    %439 = vset.pattern.permute.xlu0 0
    %440 = vperm.xlu0 %439, %v422
    %v441 = vpop.permute.xlu0 %440
    %444 = vset.pattern.permute.xlu0 0
    %445 = vperm.xlu0 %444, %v423
    %v446 = vpop.permute.xlu0 %445
    %449 = vset.pattern.permute.xlu0 0
    %450 = vperm.xlu0 %449, %v424
    %v451 = vpop.permute.xlu0 %450
    %454 = vset.pattern.permute.xlu0 0
    %455 = vperm.xlu0 %454, %v425
    %v456 = vpop.permute.xlu0 %455
    %459 = vset.pattern.permute.xlu0 0
    %460 = vperm.xlu0 %459, %v426
    %v461 = vpop.permute.xlu0 %460
    %464 = vset.pattern.permute.xlu0 0
    %465 = vperm.xlu0 %464, %v427
    %v466 = vpop.permute.xlu0 %465
    %v468 = vmul.f32 %v431, %v42
    %v469 = vmul.f32 %v436, %v43
    %v470 = vmul.f32 %v441, %v44
    %v471 = vmul.f32 %v446, %v45
    %v472 = vmul.f32 %v451, %v46
    %v473 = vmul.f32 %v456, %v47
    %v474 = vmul.f32 %v461, %v48
    %v475 = vmul.f32 %v466, %v49
    %v476 = vsel %vm149, %v468, 0.0
    %v477 = vrot.slane %v476, 4
    %v478 = vadd.f32 %v476, %v477
    %v479 = vrot.slane %v478, 2
    %v480 = vadd.f32 %v478, %v479
    %v481 = vrot.slane %v480, 1
    %v482 = vadd.f32 %v480, %v481
    %v483 = vsel %vm149, %v469, 0.0
    %v484 = vrot.slane %v483, 4
    %v485 = vadd.f32 %v483, %v484
    %v486 = vrot.slane %v485, 2
    %v487 = vadd.f32 %v485, %v486
    %v488 = vrot.slane %v487, 1
    %v489 = vadd.f32 %v487, %v488
    %v490 = vsel %vm149, %v470, 0.0
    %v491 = vrot.slane %v490, 4
    %v492 = vadd.f32 %v490, %v491
    %v493 = vrot.slane %v492, 2
    %v494 = vadd.f32 %v492, %v493
    %v495 = vrot.slane %v494, 1
    %v496 = vadd.f32 %v494, %v495
    %v497 = vsel %vm149, %v471, 0.0
    %v498 = vrot.slane %v497, 4
    %v499 = vadd.f32 %v497, %v498
    %v500 = vrot.slane %v499, 2
    %v501 = vadd.f32 %v499, %v500
    %v502 = vrot.slane %v501, 1
    %v503 = vadd.f32 %v501, %v502
    %v504 = vsel %vm149, %v472, 0.0
    %v505 = vrot.slane %v504, 4
    %v506 = vadd.f32 %v504, %v505
    %v507 = vrot.slane %v506, 2
    %v508 = vadd.f32 %v506, %v507
    %v509 = vrot.slane %v508, 1
    %v510 = vadd.f32 %v508, %v509
    %v511 = vsel %vm149, %v473, 0.0
    %v512 = vrot.slane %v511, 4
    %v513 = vadd.f32 %v511, %v512
    %v514 = vrot.slane %v513, 2
    %v515 = vadd.f32 %v513, %v514
    %v516 = vrot.slane %v515, 1
    %v517 = vadd.f32 %v515, %v516
    %v518 = vsel %vm149, %v474, 0.0
    %v519 = vrot.slane %v518, 4
    %v520 = vadd.f32 %v518, %v519
    %v521 = vrot.slane %v520, 2
    %v522 = vadd.f32 %v520, %v521
    %v523 = vrot.slane %v522, 1
    %v524 = vadd.f32 %v522, %v523
    %v525 = vsel %vm149, %v475, 0.0
    %v526 = vrot.slane %v525, 4
    %v527 = vadd.f32 %v525, %v526
    %v528 = vrot.slane %v527, 2
    %v529 = vadd.f32 %v527, %v528
    %v530 = vrot.slane %v529, 1
    %v531 = vadd.f32 %v529, %v530
    %532 = vst.msk [vmem:[#allocation7] sm:$0xff] %vm231, %v229
    %v533 = vlaneseq
    %v534 = vshrl.u32 %v533, 7
    %v535 = vsub.s32 %v183, %v534
    %v536 = vrot.slane %v431, %v535
    %v537 = vlaneseq
    %v538 = vshrl.u32 %v537, 7
    %v539 = vsub.s32 %v183, %v538
    %v540 = vrot.slane %v436, %v539
    %v541 = vlaneseq
    %v542 = vshrl.u32 %v541, 7
    %v543 = vsub.s32 %v183, %v542
    %v544 = vrot.slane %v441, %v543
    %v545 = vlaneseq
    %v546 = vshrl.u32 %v545, 7
    %v547 = vsub.s32 %v183, %v546
    %v548 = vrot.slane %v446, %v547
    %v549 = vlaneseq
    %v550 = vshrl.u32 %v549, 7
    %v551 = vsub.s32 %v183, %v550
    %v552 = vrot.slane %v451, %v551
    %v553 = vlaneseq
    %v554 = vshrl.u32 %v553, 7
    %v555 = vsub.s32 %v183, %v554
    %v556 = vrot.slane %v456, %v555
    %v557 = vlaneseq
    %v558 = vshrl.u32 %v557, 7
    %v559 = vsub.s32 %v183, %v558
    %v560 = vrot.slane %v461, %v559
    %v561 = vlaneseq
    %v562 = vshrl.u32 %v561, 7
    %v563 = vsub.s32 %v183, %v562
    %v564 = vrot.slane %v466, %v563
    %v565 = vsel %vm216, %v540, %v536
    %v566 = vsel %vm218, %v544, %v565
    %v567 = vsel %vm220, %v548, %v566
    %v568 = vsel %vm222, %v552, %v567
    %v569 = vsel %vm224, %v556, %v568
    %v570 = vsel %vm226, %v560, %v569
    %v571 = vsel %vm228, %v564, %v570
    %573 = vst.msk [vmem:[#allocation8] sm:$0xff] %vm231, %v571
    %v582 = vsel %vm216, %v489, %v482
    %v583 = vsel %vm218, %v496, %v582
    %v584 = vsel %vm220, %v503, %v583
    %v585 = vsel %vm222, %v510, %v584
    %v586 = vsel %vm224, %v517, %v585
    %v587 = vsel %vm226, %v524, %v586
    %v588 = vsel %vm228, %v531, %v587
    %590 = vst.msk [vmem:[#allocation10] sm:$0xff] %vm149, %v588
    // Predicated region
    $region18: #{tpu_custom_call.1} parent=1 // pred_check
      _
    $region19: #{tpu_custom_call.1} parent=1 // pred_check_branch
      %592 = sbr.rel (0) target = $region21
    $region20: #{tpu_custom_call.1} parent=1 // pred_region
      %s594 = ssub.s32 128, 128
      %595 = vsyncadd [#allocation4], %s594
      %s597 = sshll.u32 [#allocation7], 4
      %s598 = int_to_ptr.vmem [resolvable:$true] %s597
      %600 = dma.vmem_to_hbm [thread:$0]  %s598, 128, %s2, [#allocation4]
    $region21: #{tpu_custom_call.1} parent=1 // pred_fallthru
      _
    // Predicated region
    $region22: #{tpu_custom_call.1} parent=1 // pred_check
      _
    $region23: #{tpu_custom_call.1} parent=1 // pred_check_branch
      %602 = sbr.rel (0) target = $region25
    $region24: #{tpu_custom_call.1} parent=1 // pred_region
      %s604 = ssub.s32 128, 128
      %605 = vsyncadd [#allocation9], %s604
      %s607 = sshll.u32 [#allocation8], 4
      %s608 = int_to_ptr.vmem [resolvable:$true] %s607
      %610 = dma.vmem_to_hbm [thread:$0]  %s608, 128, %s3, [#allocation9]
    $region25: #{tpu_custom_call.1} parent=1 // pred_fallthru
      _
    // Predicated region
    $region26: #{tpu_custom_call.1} parent=1 // pred_check
      _
    $region27: #{tpu_custom_call.1} parent=1 // pred_check_branch
      %612 = sbr.rel (0) target = $region29
    $region28: #{tpu_custom_call.1} parent=1 // pred_region
      %s614 = ssub.s32 128, 128
      %615 = vsyncadd [#allocation9], %s614
      %s617 = sshll.u32 [#allocation10], 4
      %s618 = int_to_ptr.vmem [resolvable:$true] %s617
      %620 = dma.vmem_to_hbm [thread:$0]  %s618, 128, %s4, [#allocation9]
    $region29: #{tpu_custom_call.1} parent=1 // pred_fallthru
      _
    // Predicated region
    $region30: #{tpu_custom_call.1} parent=1 // pred_check
      _
    $region31: #{tpu_custom_call.1} parent=1 // pred_check_branch
      %622 = sbr.rel (0) target = $region33
    $region32: #{tpu_custom_call.1} parent=1 // pred_region
      %623 = dma.done [#allocation4], 128
    $region33: #{tpu_custom_call.1} parent=1 // pred_fallthru
      _
    // Predicated region
    $region34: #{tpu_custom_call.1} parent=1 // pred_check
      _
    $region35: #{tpu_custom_call.1} parent=1 // pred_check_branch
      %625 = sbr.rel (0) target = $region37
    $region36: #{tpu_custom_call.1} parent=1 // pred_region
      %626 = dma.done [#allocation9], 128
    $region37: #{tpu_custom_call.1} parent=1 // pred_fallthru
      _
    // Predicated region
    $region38: #{tpu_custom_call.1} parent=1 // pred_check
      _
    $region39: #{tpu_custom_call.1} parent=1 // pred_check_branch
      %628 = sbr.rel (0) target = $region41
    $region40: #{tpu_custom_call.1} parent=1 // pred_region
      %629 = dma.done [#allocation9], 128
    $region41: #{tpu_custom_call.1} parent=1 // pred_fallthru
      _
    %630 = vsyncpa [#allocation3], 1
    %631 = vsyncpa [#allocation6], 1
    %632 = vsyncpa [#allocation4], 1
    %633 = vsyncpa [#allocation9], 1

</llo_original>
